<compile_context>
chip_gen: v6e
topology: v6e:2x2x1
jax: 0.10.0
libtpu: 0.0.40
codegen_flags: <defaults>
</compile_context>

<pallas_src>
import jax
import jax.numpy as jnp
from jax import lax
from jax.experimental import pallas as pl
from jax.experimental.pallas import tpu as pltpu


def lstm_qnet_kernel(x_ref, wx_ref, wh_ref, b_ref, wlin_ref, blin_ref,
                     out_ref, xproj_ref):
    """Single-layer LSTM over the full sequence + linear head on last hidden.

    x_ref     : (T*B, D)   time-major flattened input (row t*B + b = x[b, t, :])
    wx_ref    : (D, 4H)    fused input->gate weights, gate order [i | f | g | o]
    wh_ref    : (H, 4H)    fused hidden->gate weights
    b_ref     : (1, 4H)    fused gate bias (b_ih + b_hh)
    wlin_ref  : (H, Apad)  linear head weight (transposed, lane-padded)
    blin_ref  : (1, Apad)  linear head bias (lane-padded)
    out_ref   : (B, Apad)  q-values (lane-padded)
    xproj_ref : (T, B, 4H) VMEM scratch for the hoisted input projection
    """
    TB, _ = x_ref.shape
    H = wh_ref.shape[0]
    G4 = wh_ref.shape[1]
    B = out_ref.shape[0]
    T = TB // B

    # --- Hoisted input projection: all timesteps in one MXU matmul, written
    #     to VMEM scratch so only (B, 4H) rows are live per recurrence step.
    xproj = jnp.dot(x_ref[...], wx_ref[...],
                    preferred_element_type=jnp.float32) + b_ref[...]   # (T*B, 4H)
    xproj_ref[...] = xproj.reshape(T, B, G4)

    wh = wh_ref[...]                                                   # (H, 4H), loaded once

    # --- Recurrence with register-carried state (h0 = c0 = 0).
    def step(t, carry):
        h, c = carry
        pre = xproj_ref[t] + jnp.dot(h, wh,
                                     preferred_element_type=jnp.float32)  # (B, 4H)

        # Full-width activations (2 EUP pushes), then lane-select the gates.
        sig = jax.nn.sigmoid(pre)
        th = jnp.tanh(pre)

        i_g = sig[:, 0 * H:1 * H]
        f_g = sig[:, 1 * H:2 * H]
        g_g = th[:, 2 * H:3 * H]
        o_g = sig[:, 3 * H:4 * H]

        c_new = f_g * c + i_g * g_g
        h_new = o_g * jnp.tanh(c_new)
        return (h_new, c_new)

    h0 = jnp.zeros((B, H), jnp.float32)
    c0 = jnp.zeros((B, H), jnp.float32)
    h, _ = lax.fori_loop(0, T, step, (h0, c0), unroll=True)

    # --- Linear head on the last hidden state (lane-dense, unmasked store).
    out_ref[...] = (jnp.dot(h, wlin_ref[...],
                            preferred_element_type=jnp.float32)
                    + blin_ref[...])


def lstm_qnet(x, wx, wh, b, wlin, blin):
    """x: (B, T, D) batch_first, like the PyTorch module. Returns (B, A)."""
    B, T, D = x.shape
    H = wh.shape[0]
    G4 = wh.shape[1]
    A = wlin.shape[-1]

    # Sublane fill: pad batch up to a multiple of 8 (padded rows are zeros and
    # are sliced off afterwards — they never touch the real rows).
    B_pad = max(8, ((B + 7) // 8) * 8)
    # Lane-dense head: pad A up to a multiple of 128 so the output store is
    # an unmasked vst and the head matmul N-dim is lane-dense.
    A_pad = ((A + 127) // 128) * 128

    x_p = jnp.zeros((B_pad, T, D), jnp.float32).at[:B].set(x)
    # Layout plumbing in the wrapper: time-major flatten so each timestep's
    # rows are contiguous inside the kernel (row t*B_pad + b).
    x_tm = jnp.transpose(x_p, (1, 0, 2)).reshape(T * B_pad, D)

    wlin_p = jnp.zeros((H, A_pad), jnp.float32).at[:, :A].set(wlin)
    blin_p = jnp.zeros((1, A_pad), jnp.float32).at[:, :A].set(blin)

    bytes_in = 4 * (x_tm.size + wx.size + wh.size + b.size
                    + wlin_p.size + blin_p.size + B_pad * A_pad)
    cost = pl.CostEstimate(
        flops=int(2 * T * B_pad * (D + H) * G4 + 2 * B_pad * H * A_pad),
        transcendentals=int(T * B_pad * (2 * G4 + H)),
        bytes_accessed=int(bytes_in),
    )

    out = pl.pallas_call(
        lstm_qnet_kernel,
        out_shape=jax.ShapeDtypeStruct((B_pad, A_pad), jnp.float32),
        in_specs=[pl.BlockSpec(memory_space=pltpu.MemorySpace.VMEM)] * 6,
        out_specs=pl.BlockSpec(memory_space=pltpu.MemorySpace.VMEM),
        scratch_shapes=[pltpu.VMEM((T, B_pad, G4), jnp.float32)],
        cost_estimate=cost,
    )(x_tm, wx, wh, b, wlin_p, blin_p)

    return out[:B, :A]


def reference_forward(x, wx, wh, b, wlin, blin):
    """Plain-JAX reference mirroring torch.nn.LSTM(batch_first) + Linear."""
    B, T, D = x.shape
    H = wh.shape[0]
    h = jnp.zeros((B, H), jnp.float32)
    c = jnp.zeros((B, H), jnp.float32)
    for t in range(T):
        pre = x[:, t, :] @ wx + h @ wh + b                  # (B, 4H)
        i_g = jax.nn.sigmoid(pre[:, 0 * H:1 * H])
        f_g = jax.nn.sigmoid(pre[:, 1 * H:2 * H])
        g_g = jnp.tanh(pre[:, 2 * H:3 * H])
        o_g = jax.nn.sigmoid(pre[:, 3 * H:4 * H])
        c = f_g * c + i_g * g_g
        h = o_g * jnp.tanh(c)
    return h @ wlin + blin


if __name__ == "__main__":
    # Small shapes consistent with the module's forward.
    B, T, D = 2, 8, 4          # batch, seq_len, state_dim
    H, A = 32, 3               # hidden_dim, action_n
    G4 = 4 * H                 # fused gate width = 128 lanes

    key = jax.random.PRNGKey(0)
    ks = jax.random.split(key, 7)
    bound = 1.0 / jnp.sqrt(H)  # same scale as PyTorch's LSTM/Linear init

    x    = jax.random.normal(ks[0], (B, T, D), jnp.float32)
    # Fused weights: columns ordered [i | f | g | o] (== torch weight_ih.T etc.)
    wx   = jax.random.uniform(ks[1], (D, G4), jnp.float32, -bound, bound)
    wh   = jax.random.uniform(ks[2], (H, G4), jnp.float32, -bound, bound)
    # combined bias = b_ih + b_hh (two uniforms summed, kept as one tensor)
    b    = (jax.random.uniform(ks[3], (1, G4), jnp.float32, -bound, bound)
            + jax.random.uniform(ks[4], (1, G4), jnp.float32, -bound, bound))
    wlin = jax.random.uniform(ks[5], (H, A), jnp.float32, -bound, bound)
    blin = jax.random.uniform(ks[6], (1, A), jnp.float32, -bound, bound)

    q = lstm_qnet(x, wx, wh, b, wlin, blin)
    q = jax.block_until_ready(q)

    q_ref = reference_forward(x, wx, wh, b, wlin, blin)
    assert q.shape == (B, A)
    assert jnp.allclose(q, q_ref, atol=1e-5, rtol=1e-5), "mismatch vs reference"

    print("KERNEL_OK")
</pallas_src>

<mosaic_0001>
module attributes {stable_mosaic.version = 11 : i64} {
  func.func @lstm_qnet_kernel(%arg0: memref<64x4xf32, #tpu.memory_space<vmem>>, %arg1: memref<4x128xf32, #tpu.memory_space<vmem>>, %arg2: memref<32x128xf32, #tpu.memory_space<vmem>>, %arg3: memref<1x128xf32, #tpu.memory_space<vmem>>, %arg4: memref<32x128xf32, #tpu.memory_space<vmem>>, %arg5: memref<1x128xf32, #tpu.memory_space<vmem>>, %arg6: memref<8x128xf32, #tpu.memory_space<vmem>>, %arg7: memref<8x8x128xf32, #tpu.memory_space<vmem>>) attributes {dimension_semantics = [], scalar_prefetch = 0 : i64, scratch_operands = 1 : i64, tpu.core_type = #tpu.core_type<tc>} {
    %c0 = arith.constant 0 : index
    %c0_0 = arith.constant 0 : index
    %0 = vector.load %arg0[%c0, %c0_0] : memref<64x4xf32, #tpu.memory_space<vmem>>, vector<64x4xf32>
    %c0_1 = arith.constant 0 : index
    %c0_2 = arith.constant 0 : index
    %1 = vector.load %arg1[%c0_1, %c0_2] : memref<4x128xf32, #tpu.memory_space<vmem>>, vector<4x128xf32>
    %cst = arith.constant dense<0.000000e+00> : vector<64x128xf32>
    %2 = tpu.matmul %0, %1, %cst {dimension_numbers = #tpu.dot_dimension_numbers<[1], [0], [0], [1], [0, 0, 1, 1], [], []>} : vector<64x4xf32>, vector<4x128xf32>, vector<64x128xf32> -> vector<64x128xf32>
    %c0_3 = arith.constant 0 : index
    %c0_4 = arith.constant 0 : index
    %3 = vector.load %arg3[%c0_3, %c0_4] : memref<1x128xf32, #tpu.memory_space<vmem>>, vector<1x128xf32>
    %4 = vector.broadcast %3 : vector<1x128xf32> to vector<64x128xf32>
    %5 = arith.addf %2, %4 : vector<64x128xf32>
    %6 = vector.shape_cast %5 : vector<64x128xf32> to vector<8x8x128xf32>
    %c0_5 = arith.constant 0 : index
    %c0_6 = arith.constant 0 : index
    %c0_7 = arith.constant 0 : index
    %7 = vector.load %arg7[%c0_5, %c0_6, %c0_7] : memref<8x8x128xf32, #tpu.memory_space<vmem>>, vector<8x8x128xf32>
    tpu.vector_store %arg7[%c0_5, %c0_6, %c0_7], %6 {strides = array<i32>} : memref<8x8x128xf32, #tpu.memory_space<vmem>>, vector<8x8x128xf32>,
    %c0_8 = arith.constant 0 : index
    %c0_9 = arith.constant 0 : index
    %8 = vector.load %arg2[%c0_8, %c0_9] : memref<32x128xf32, #tpu.memory_space<vmem>>, vector<32x128xf32>
    %cst_10 = arith.constant 0.000000e+00 : f32
    %9 = vector.broadcast %cst_10 : f32 to vector<8x32xf32>
    %cst_11 = arith.constant 0.000000e+00 : f32
    %10 = vector.broadcast %cst_11 : f32 to vector<8x32xf32>
    %c0_i32 = arith.constant 0 : i32
    %11 = arith.index_cast %c0_i32 : i32 to index
    %c0_12 = arith.constant 0 : index
    %c0_13 = arith.constant 0 : index
    %12 = vector.load %arg7[%11, %c0_12, %c0_13] : memref<8x8x128xf32, #tpu.memory_space<vmem>>, vector<1x8x128xf32>
    %13 = vector.shape_cast %12 : vector<1x8x128xf32> to vector<8x128xf32>
    %cst_14 = arith.constant dense<0.000000e+00> : vector<8x128xf32>
    %14 = tpu.matmul %9, %8, %cst_14 {dimension_numbers = #tpu.dot_dimension_numbers<[1], [0], [0], [1], [0, 0, 1, 1], [], []>} : vector<8x32xf32>, vector<32x128xf32>, vector<8x128xf32> -> vector<8x128xf32>
    %15 = arith.addf %13, %14 : vector<8x128xf32>
    %16 = arith.negf %15 : vector<8x128xf32>
    %17 = math.exp %16 : vector<8x128xf32>
    %cst_15 = arith.constant 1.000000e+00 : f32
    %18 = vector.broadcast %cst_15 : f32 to vector<8x128xf32>
    %19 = arith.addf %18, %17 : vector<8x128xf32>
    %20 = arith.divf %18, %19 : vector<8x128xf32>
    %21 = math.tanh %15 : vector<8x128xf32>
    %22 = vector.extract_strided_slice %20 {offsets = [0, 0], sizes = [8, 32], strides = [1, 1]} : vector<8x128xf32> to vector<8x32xf32>
    %23 = vector.extract_strided_slice %20 {offsets = [0, 32], sizes = [8, 32], strides = [1, 1]} : vector<8x128xf32> to vector<8x32xf32>
    %24 = vector.extract_strided_slice %21 {offsets = [0, 64], sizes = [8, 32], strides = [1, 1]} : vector<8x128xf32> to vector<8x32xf32>
    %25 = vector.extract_strided_slice %20 {offsets = [0, 96], sizes = [8, 32], strides = [1, 1]} : vector<8x128xf32> to vector<8x32xf32>
    %26 = arith.mulf %23, %10 : vector<8x32xf32>
    %27 = arith.mulf %22, %24 : vector<8x32xf32>
    %28 = arith.addf %26, %27 : vector<8x32xf32>
    %29 = math.tanh %28 : vector<8x32xf32>
    %30 = arith.mulf %25, %29 : vector<8x32xf32>
    %c1_i32 = arith.constant 1 : i32
    %31 = arith.index_cast %c1_i32 : i32 to index
    %c0_16 = arith.constant 0 : index
    %c0_17 = arith.constant 0 : index
    %32 = vector.load %arg7[%31, %c0_16, %c0_17] : memref<8x8x128xf32, #tpu.memory_space<vmem>>, vector<1x8x128xf32>
    %33 = vector.shape_cast %32 : vector<1x8x128xf32> to vector<8x128xf32>
    %cst_18 = arith.constant dense<0.000000e+00> : vector<8x128xf32>
    %34 = tpu.matmul %30, %8, %cst_18 {dimension_numbers = #tpu.dot_dimension_numbers<[1], [0], [0], [1], [0, 0, 1, 1], [], []>} : vector<8x32xf32>, vector<32x128xf32>, vector<8x128xf32> -> vector<8x128xf32>
    %35 = arith.addf %33, %34 : vector<8x128xf32>
    %36 = arith.negf %35 : vector<8x128xf32>
    %37 = math.exp %36 : vector<8x128xf32>
    %cst_19 = arith.constant 1.000000e+00 : f32
    %38 = vector.broadcast %cst_19 : f32 to vector<8x128xf32>
    %39 = arith.addf %38, %37 : vector<8x128xf32>
    %40 = arith.divf %38, %39 : vector<8x128xf32>
    %41 = math.tanh %35 : vector<8x128xf32>
    %42 = vector.extract_strided_slice %40 {offsets = [0, 0], sizes = [8, 32], strides = [1, 1]} : vector<8x128xf32> to vector<8x32xf32>
    %43 = vector.extract_strided_slice %40 {offsets = [0, 32], sizes = [8, 32], strides = [1, 1]} : vector<8x128xf32> to vector<8x32xf32>
    %44 = vector.extract_strided_slice %41 {offsets = [0, 64], sizes = [8, 32], strides = [1, 1]} : vector<8x128xf32> to vector<8x32xf32>
    %45 = vector.extract_strided_slice %40 {offsets = [0, 96], sizes = [8, 32], strides = [1, 1]} : vector<8x128xf32> to vector<8x32xf32>
    %46 = arith.mulf %43, %28 : vector<8x32xf32>
    %47 = arith.mulf %42, %44 : vector<8x32xf32>
    %48 = arith.addf %46, %47 : vector<8x32xf32>
    %49 = math.tanh %48 : vector<8x32xf32>
    %50 = arith.mulf %45, %49 : vector<8x32xf32>
    %c2_i32 = arith.constant 2 : i32
    %51 = arith.index_cast %c2_i32 : i32 to index
    %c0_20 = arith.constant 0 : index
    %c0_21 = arith.constant 0 : index
    %52 = vector.load %arg7[%51, %c0_20, %c0_21] : memref<8x8x128xf32, #tpu.memory_space<vmem>>, vector<1x8x128xf32>
    %53 = vector.shape_cast %52 : vector<1x8x128xf32> to vector<8x128xf32>
    %cst_22 = arith.constant dense<0.000000e+00> : vector<8x128xf32>
    %54 = tpu.matmul %50, %8, %cst_22 {dimension_numbers = #tpu.dot_dimension_numbers<[1], [0], [0], [1], [0, 0, 1, 1], [], []>} : vector<8x32xf32>, vector<32x128xf32>, vector<8x128xf32> -> vector<8x128xf32>
    %55 = arith.addf %53, %54 : vector<8x128xf32>
    %56 = arith.negf %55 : vector<8x128xf32>
    %57 = math.exp %56 : vector<8x128xf32>
    %cst_23 = arith.constant 1.000000e+00 : f32
    %58 = vector.broadcast %cst_23 : f32 to vector<8x128xf32>
    %59 = arith.addf %58, %57 : vector<8x128xf32>
    %60 = arith.divf %58, %59 : vector<8x128xf32>
    %61 = math.tanh %55 : vector<8x128xf32>
    %62 = vector.extract_strided_slice %60 {offsets = [0, 0], sizes = [8, 32], strides = [1, 1]} : vector<8x128xf32> to vector<8x32xf32>
    %63 = vector.extract_strided_slice %60 {offsets = [0, 32], sizes = [8, 32], strides = [1, 1]} : vector<8x128xf32> to vector<8x32xf32>
    %64 = vector.extract_strided_slice %61 {offsets = [0, 64], sizes = [8, 32], strides = [1, 1]} : vector<8x128xf32> to vector<8x32xf32>
    %65 = vector.extract_strided_slice %60 {offsets = [0, 96], sizes = [8, 32], strides = [1, 1]} : vector<8x128xf32> to vector<8x32xf32>
    %66 = arith.mulf %63, %48 : vector<8x32xf32>
    %67 = arith.mulf %62, %64 : vector<8x32xf32>
    %68 = arith.addf %66, %67 : vector<8x32xf32>
    %69 = math.tanh %68 : vector<8x32xf32>
    %70 = arith.mulf %65, %69 : vector<8x32xf32>
    %c3_i32 = arith.constant 3 : i32
    %71 = arith.index_cast %c3_i32 : i32 to index
    %c0_24 = arith.constant 0 : index
    %c0_25 = arith.constant 0 : index
    %72 = vector.load %arg7[%71, %c0_24, %c0_25] : memref<8x8x128xf32, #tpu.memory_space<vmem>>, vector<1x8x128xf32>
    %73 = vector.shape_cast %72 : vector<1x8x128xf32> to vector<8x128xf32>
    %cst_26 = arith.constant dense<0.000000e+00> : vector<8x128xf32>
    %74 = tpu.matmul %70, %8, %cst_26 {dimension_numbers = #tpu.dot_dimension_numbers<[1], [0], [0], [1], [0, 0, 1, 1], [], []>} : vector<8x32xf32>, vector<32x128xf32>, vector<8x128xf32> -> vector<8x128xf32>
    %75 = arith.addf %73, %74 : vector<8x128xf32>
    %76 = arith.negf %75 : vector<8x128xf32>
    %77 = math.exp %76 : vector<8x128xf32>
    %cst_27 = arith.constant 1.000000e+00 : f32
    %78 = vector.broadcast %cst_27 : f32 to vector<8x128xf32>
    %79 = arith.addf %78, %77 : vector<8x128xf32>
    %80 = arith.divf %78, %79 : vector<8x128xf32>
    %81 = math.tanh %75 : vector<8x128xf32>
    %82 = vector.extract_strided_slice %80 {offsets = [0, 0], sizes = [8, 32], strides = [1, 1]} : vector<8x128xf32> to vector<8x32xf32>
    %83 = vector.extract_strided_slice %80 {offsets = [0, 32], sizes = [8, 32], strides = [1, 1]} : vector<8x128xf32> to vector<8x32xf32>
    %84 = vector.extract_strided_slice %81 {offsets = [0, 64], sizes = [8, 32], strides = [1, 1]} : vector<8x128xf32> to vector<8x32xf32>
    %85 = vector.extract_strided_slice %80 {offsets = [0, 96], sizes = [8, 32], strides = [1, 1]} : vector<8x128xf32> to vector<8x32xf32>
    %86 = arith.mulf %83, %68 : vector<8x32xf32>
    %87 = arith.mulf %82, %84 : vector<8x32xf32>
    %88 = arith.addf %86, %87 : vector<8x32xf32>
    %89 = math.tanh %88 : vector<8x32xf32>
    %90 = arith.mulf %85, %89 : vector<8x32xf32>
    %c4_i32 = arith.constant 4 : i32
    %91 = arith.index_cast %c4_i32 : i32 to index
    %c0_28 = arith.constant 0 : index
    %c0_29 = arith.constant 0 : index
    %92 = vector.load %arg7[%91, %c0_28, %c0_29] : memref<8x8x128xf32, #tpu.memory_space<vmem>>, vector<1x8x128xf32>
    %93 = vector.shape_cast %92 : vector<1x8x128xf32> to vector<8x128xf32>
    %cst_30 = arith.constant dense<0.000000e+00> : vector<8x128xf32>
    %94 = tpu.matmul %90, %8, %cst_30 {dimension_numbers = #tpu.dot_dimension_numbers<[1], [0], [0], [1], [0, 0, 1, 1], [], []>} : vector<8x32xf32>, vector<32x128xf32>, vector<8x128xf32> -> vector<8x128xf32>
    %95 = arith.addf %93, %94 : vector<8x128xf32>
    %96 = arith.negf %95 : vector<8x128xf32>
    %97 = math.exp %96 : vector<8x128xf32>
    %cst_31 = arith.constant 1.000000e+00 : f32
    %98 = vector.broadcast %cst_31 : f32 to vector<8x128xf32>
    %99 = arith.addf %98, %97 : vector<8x128xf32>
    %100 = arith.divf %98, %99 : vector<8x128xf32>
    %101 = math.tanh %95 : vector<8x128xf32>
    %102 = vector.extract_strided_slice %100 {offsets = [0, 0], sizes = [8, 32], strides = [1, 1]} : vector<8x128xf32> to vector<8x32xf32>
    %103 = vector.extract_strided_slice %100 {offsets = [0, 32], sizes = [8, 32], strides = [1, 1]} : vector<8x128xf32> to vector<8x32xf32>
    %104 = vector.extract_strided_slice %101 {offsets = [0, 64], sizes = [8, 32], strides = [1, 1]} : vector<8x128xf32> to vector<8x32xf32>
    %105 = vector.extract_strided_slice %100 {offsets = [0, 96], sizes = [8, 32], strides = [1, 1]} : vector<8x128xf32> to vector<8x32xf32>
    %106 = arith.mulf %103, %88 : vector<8x32xf32>
    %107 = arith.mulf %102, %104 : vector<8x32xf32>
    %108 = arith.addf %106, %107 : vector<8x32xf32>
    %109 = math.tanh %108 : vector<8x32xf32>
    %110 = arith.mulf %105, %109 : vector<8x32xf32>
    %c5_i32 = arith.constant 5 : i32
    %111 = arith.index_cast %c5_i32 : i32 to index
    %c0_32 = arith.constant 0 : index
    %c0_33 = arith.constant 0 : index
    %112 = vector.load %arg7[%111, %c0_32, %c0_33] : memref<8x8x128xf32, #tpu.memory_space<vmem>>, vector<1x8x128xf32>
    %113 = vector.shape_cast %112 : vector<1x8x128xf32> to vector<8x128xf32>
    %cst_34 = arith.constant dense<0.000000e+00> : vector<8x128xf32>
    %114 = tpu.matmul %110, %8, %cst_34 {dimension_numbers = #tpu.dot_dimension_numbers<[1], [0], [0], [1], [0, 0, 1, 1], [], []>} : vector<8x32xf32>, vector<32x128xf32>, vector<8x128xf32> -> vector<8x128xf32>
    %115 = arith.addf %113, %114 : vector<8x128xf32>
    %116 = arith.negf %115 : vector<8x128xf32>
    %117 = math.exp %116 : vector<8x128xf32>
    %cst_35 = arith.constant 1.000000e+00 : f32
    %118 = vector.broadcast %cst_35 : f32 to vector<8x128xf32>
    %119 = arith.addf %118, %117 : vector<8x128xf32>
    %120 = arith.divf %118, %119 : vector<8x128xf32>
    %121 = math.tanh %115 : vector<8x128xf32>
    %122 = vector.extract_strided_slice %120 {offsets = [0, 0], sizes = [8, 32], strides = [1, 1]} : vector<8x128xf32> to vector<8x32xf32>
    %123 = vector.extract_strided_slice %120 {offsets = [0, 32], sizes = [8, 32], strides = [1, 1]} : vector<8x128xf32> to vector<8x32xf32>
    %124 = vector.extract_strided_slice %121 {offsets = [0, 64], sizes = [8, 32], strides = [1, 1]} : vector<8x128xf32> to vector<8x32xf32>
    %125 = vector.extract_strided_slice %120 {offsets = [0, 96], sizes = [8, 32], strides = [1, 1]} : vector<8x128xf32> to vector<8x32xf32>
    %126 = arith.mulf %123, %108 : vector<8x32xf32>
    %127 = arith.mulf %122, %124 : vector<8x32xf32>
    %128 = arith.addf %126, %127 : vector<8x32xf32>
    %129 = math.tanh %128 : vector<8x32xf32>
    %130 = arith.mulf %125, %129 : vector<8x32xf32>
    %c6_i32 = arith.constant 6 : i32
    %131 = arith.index_cast %c6_i32 : i32 to index
    %c0_36 = arith.constant 0 : index
    %c0_37 = arith.constant 0 : index
    %132 = vector.load %arg7[%131, %c0_36, %c0_37] : memref<8x8x128xf32, #tpu.memory_space<vmem>>, vector<1x8x128xf32>
    %133 = vector.shape_cast %132 : vector<1x8x128xf32> to vector<8x128xf32>
    %cst_38 = arith.constant dense<0.000000e+00> : vector<8x128xf32>
    %134 = tpu.matmul %130, %8, %cst_38 {dimension_numbers = #tpu.dot_dimension_numbers<[1], [0], [0], [1], [0, 0, 1, 1], [], []>} : vector<8x32xf32>, vector<32x128xf32>, vector<8x128xf32> -> vector<8x128xf32>
    %135 = arith.addf %133, %134 : vector<8x128xf32>
    %136 = arith.negf %135 : vector<8x128xf32>
    %137 = math.exp %136 : vector<8x128xf32>
    %cst_39 = arith.constant 1.000000e+00 : f32
    %138 = vector.broadcast %cst_39 : f32 to vector<8x128xf32>
    %139 = arith.addf %138, %137 : vector<8x128xf32>
    %140 = arith.divf %138, %139 : vector<8x128xf32>
    %141 = math.tanh %135 : vector<8x128xf32>
    %142 = vector.extract_strided_slice %140 {offsets = [0, 0], sizes = [8, 32], strides = [1, 1]} : vector<8x128xf32> to vector<8x32xf32>
    %143 = vector.extract_strided_slice %140 {offsets = [0, 32], sizes = [8, 32], strides = [1, 1]} : vector<8x128xf32> to vector<8x32xf32>
    %144 = vector.extract_strided_slice %141 {offsets = [0, 64], sizes = [8, 32], strides = [1, 1]} : vector<8x128xf32> to vector<8x32xf32>
    %145 = vector.extract_strided_slice %140 {offsets = [0, 96], sizes = [8, 32], strides = [1, 1]} : vector<8x128xf32> to vector<8x32xf32>
    %146 = arith.mulf %143, %128 : vector<8x32xf32>
    %147 = arith.mulf %142, %144 : vector<8x32xf32>
    %148 = arith.addf %146, %147 : vector<8x32xf32>
    %149 = math.tanh %148 : vector<8x32xf32>
    %150 = arith.mulf %145, %149 : vector<8x32xf32>
    %c7_i32 = arith.constant 7 : i32
    %151 = arith.index_cast %c7_i32 : i32 to index
    %c0_40 = arith.constant 0 : index
    %c0_41 = arith.constant 0 : index
    %152 = vector.load %arg7[%151, %c0_40, %c0_41] : memref<8x8x128xf32, #tpu.memory_space<vmem>>, vector<1x8x128xf32>
    %153 = vector.shape_cast %152 : vector<1x8x128xf32> to vector<8x128xf32>
    %cst_42 = arith.constant dense<0.000000e+00> : vector<8x128xf32>
    %154 = tpu.matmul %150, %8, %cst_42 {dimension_numbers = #tpu.dot_dimension_numbers<[1], [0], [0], [1], [0, 0, 1, 1], [], []>} : vector<8x32xf32>, vector<32x128xf32>, vector<8x128xf32> -> vector<8x128xf32>
    %155 = arith.addf %153, %154 : vector<8x128xf32>
    %156 = arith.negf %155 : vector<8x128xf32>
    %157 = math.exp %156 : vector<8x128xf32>
    %cst_43 = arith.constant 1.000000e+00 : f32
    %158 = vector.broadcast %cst_43 : f32 to vector<8x128xf32>
    %159 = arith.addf %158, %157 : vector<8x128xf32>
    %160 = arith.divf %158, %159 : vector<8x128xf32>
    %161 = math.tanh %155 : vector<8x128xf32>
    %162 = vector.extract_strided_slice %160 {offsets = [0, 0], sizes = [8, 32], strides = [1, 1]} : vector<8x128xf32> to vector<8x32xf32>
    %163 = vector.extract_strided_slice %160 {offsets = [0, 32], sizes = [8, 32], strides = [1, 1]} : vector<8x128xf32> to vector<8x32xf32>
    %164 = vector.extract_strided_slice %161 {offsets = [0, 64], sizes = [8, 32], strides = [1, 1]} : vector<8x128xf32> to vector<8x32xf32>
    %165 = vector.extract_strided_slice %160 {offsets = [0, 96], sizes = [8, 32], strides = [1, 1]} : vector<8x128xf32> to vector<8x32xf32>
    %166 = arith.mulf %163, %148 : vector<8x32xf32>
    %167 = arith.mulf %162, %164 : vector<8x32xf32>
    %168 = arith.addf %166, %167 : vector<8x32xf32>
    %169 = math.tanh %168 : vector<8x32xf32>
    %170 = arith.mulf %165, %169 : vector<8x32xf32>
    %c8_i32 = arith.constant 8 : i32
    %c0_44 = arith.constant 0 : index
    %c0_45 = arith.constant 0 : index
    %171 = vector.load %arg4[%c0_44, %c0_45] : memref<32x128xf32, #tpu.memory_space<vmem>>, vector<32x128xf32>
    %cst_46 = arith.constant dense<0.000000e+00> : vector<8x128xf32>
    %172 = tpu.matmul %170, %171, %cst_46 {dimension_numbers = #tpu.dot_dimension_numbers<[1], [0], [0], [1], [0, 0, 1, 1], [], []>} : vector<8x32xf32>, vector<32x128xf32>, vector<8x128xf32> -> vector<8x128xf32>
    %c0_47 = arith.constant 0 : index
    %c0_48 = arith.constant 0 : index
    %173 = vector.load %arg5[%c0_47, %c0_48] : memref<1x128xf32, #tpu.memory_space<vmem>>, vector<1x128xf32>
    %174 = vector.broadcast %173 : vector<1x128xf32> to vector<8x128xf32>
    %175 = arith.addf %172, %174 : vector<8x128xf32>
    %c0_49 = arith.constant 0 : index
    %c0_50 = arith.constant 0 : index
    %176 = vector.load %arg6[%c0_49, %c0_50] : memref<8x128xf32, #tpu.memory_space<vmem>>, vector<8x128xf32>
    tpu.vector_store %arg6[%c0_49, %c0_50], %175 {strides = array<i32>} : memref<8x128xf32, #tpu.memory_space<vmem>>, vector<8x128xf32>,
    return
  }
}

</mosaic_0001>

<llo_original>
// kernel: tpu_custom_call.1
$region0: #{tpu_custom_call.1}
  #allocation0 [shape = 'u32[]', space=smem, size = 0x4, offset = 0x4, fixed_abs, tag = 'smem constant byte address 0x4 - core index']
  #allocation1 [shape = 'u32[144,128]{1,0:T(1,128)}', space=vmem, size = 0x12000, scoped, tag = 'internal scratch']
  #allocation2 [shape = 'f32[8,8,128]{2,1,0:T(8,128)}', space=vmem, size = 0x8000, scoped, tag = 'scratch operand']
  %s0 = inlined_call_operand.vmem [shape: f32[64,4], index: 0, kind: input, shape index: {}]
  %s1 = inlined_call_operand.vmem [shape: f32[4,128], index: 1, kind: input, shape index: {}]
  %s2 = inlined_call_operand.vmem [shape: f32[32,128], index: 2, kind: input, shape index: {}]
  %s3 = inlined_call_operand.vmem [shape: f32[1,128], index: 3, kind: input, shape index: {}]
  %s4 = inlined_call_operand.vmem [shape: f32[32,128], index: 4, kind: input, shape index: {}]
  %s5 = inlined_call_operand.vmem [shape: f32[1,128], index: 5, kind: input, shape index: {}]
  %s6 = inlined_call_operand.hbm [shape: f32[8,128], index: 6, kind: output, shape index: {}]
  %s7 = sld [smem:[#allocation0]]
  $region34: #{tpu_custom_call.1} parent=0
    _
  %s9 = ssub.s32 1, %s7
  %s10 = scalar_select 0, %s9, %s7
  $region1: #{tpu_custom_call.1} parent=0
    #allocation3 [shape = 'u8[4096]{0}', space=vmem, size = 0x1000, scoped, tag = 'output window, operand 0, single buffered']
    #allocation4 [shape = 's32[1]{0}', space=sflag, size = 0x4, scoped, tag = 'scoped memory for tpu_custom_call.1']
    %11 = vsyncpa [#allocation4], 0
    // Predicated region
    $region2: #{tpu_custom_call.1} parent=1 // pred_check
      _
    $region3: #{tpu_custom_call.1} parent=1 // pred_check_branch
      %13 = sbr.rel (0) target = $region5
    $region4: #{tpu_custom_call.1} parent=1 // pred_region
      _
    $region5: #{tpu_custom_call.1} parent=1 // pred_fallthru
      _
    // Predicated region
    $region6: #{tpu_custom_call.1} parent=1 // pred_check
      _
    $region7: #{tpu_custom_call.1} parent=1 // pred_check_branch
      %15 = sbr.rel (0) target = $region9
    $region8: #{tpu_custom_call.1} parent=1 // pred_region
      _
    $region9: #{tpu_custom_call.1} parent=1 // pred_fallthru
      _
    // Predicated region
    $region10: #{tpu_custom_call.1} parent=1 // pred_check
      _
    $region11: #{tpu_custom_call.1} parent=1 // pred_check_branch
      %17 = sbr.rel (0) target = $region13
    $region12: #{tpu_custom_call.1} parent=1 // pred_region
      _
    $region13: #{tpu_custom_call.1} parent=1 // pred_fallthru
      _
    // Predicated region
    $region14: #{tpu_custom_call.1} parent=1 // pred_check
      _
    $region15: #{tpu_custom_call.1} parent=1 // pred_check_branch
      %19 = sbr.rel (0) target = $region17
    $region16: #{tpu_custom_call.1} parent=1 // pred_region
      _
    $region17: #{tpu_custom_call.1} parent=1 // pred_fallthru
      _
    // Predicated region
    $region18: #{tpu_custom_call.1} parent=1 // pred_check
      _
    $region19: #{tpu_custom_call.1} parent=1 // pred_check_branch
      %21 = sbr.rel (0) target = $region21
    $region20: #{tpu_custom_call.1} parent=1 // pred_region
      _
    $region21: #{tpu_custom_call.1} parent=1 // pred_fallthru
      _
    // Predicated region
    $region22: #{tpu_custom_call.1} parent=1 // pred_check
      _
    $region23: #{tpu_custom_call.1} parent=1 // pred_check_branch
      %23 = sbr.rel (0) target = $region25
    $region24: #{tpu_custom_call.1} parent=1 // pred_region
      _
    $region25: #{tpu_custom_call.1} parent=1 // pred_fallthru
      _
    %v24 = vld [vmem:[%s0] sm:$0xff]
    %v25 = vld [vmem:[%s0 + $0x8] sm:$0xff]
    %v26 = vld [vmem:[%s0 + $0x10] sm:$0xff]
    %v27 = vld [vmem:[%s0 + $0x18] sm:$0xff]
    %v28 = vld [vmem:[%s0 + $0x20] sm:$0xff]
    %v29 = vld [vmem:[%s0 + $0x28] sm:$0xff]
    %v30 = vld [vmem:[%s0 + $0x30] sm:$0xff]
    %v31 = vld [vmem:[%s0 + $0x38] sm:$0xff]
    %v32 = vld [vmem:[%s1] sm:$0xf]
    %v33 = vld [vmem:[%s3] sm:$0x1]
    %v35 = vlaneseq
    %v36 = vshrl.u32 %v35, 7
    %v37 = vsub.s32 0, %v36
    %v38 = vrot.slane %v33, %v37
    %vm40 = vcmask 31744
    %v42 = vsel %vm40, %v24, 0
    %v45 = vsel %vm40, %v25, 0
    %v48 = vsel %vm40, %v26, 0
    %v51 = vsel %vm40, %v27, 0
    %v54 = vsel %vm40, %v28, 0
    %v57 = vsel %vm40, %v29, 0
    %v60 = vsel %vm40, %v30, 0
    %v63 = vsel %vm40, %v31, 0
    %vm65 = vcmask 1043456
    %v67 = vsel %vm65, %v32, 0
    %69 = vmatprep.subr.mxu0 0.0
    %70 = vmatpush1.msra.mxu0 0.0
    %71 = vmatprep.subr.mxu0 0.0
    %72 = vmatpush1.msra.mxu0 0.0
    %73 = vmatprep.subr.mxu0 0.0
    %74 = vmatpush1.msra.mxu0 0.0
    %75 = vmatprep.subr.mxu0 0.0
    %76 = vmatpush1.msra.mxu0 0.0
    %77 = vmatprep.subr.mxu0 0.0
    %78 = vmatpush1.msra.mxu0 0.0
    %79 = vmatprep.subr.mxu0 0.0
    %80 = vmatpush1.msra.mxu0 0.0
    %81 = vmatprep.subr.mxu0 0.0
    %82 = vmatpush1.msra.mxu0 0.0
    %83 = vmatprep.subr.mxu0 0.0
    %84 = vmatpush1.msra.mxu0 0.0
    %85 = vmatprep.subr.mxu0 0.0
    %86 = vmatpush1.msra.mxu0 0.0
    %87 = vmatprep.subr.mxu0 0.0
    %88 = vmatpush1.msra.mxu0 0.0
    %89 = vmatprep.subr.mxu0 0.0
    %90 = vmatpush1.msra.mxu0 0.0
    %91 = vmatprep.subr.mxu0 0.0
    %92 = vmatpush1.msra.mxu0 0.0
    %93 = vmatprep.subr.mxu0 0.0
    %94 = vmatpush1.msra.mxu0 0.0
    %95 = vmatprep.subr.mxu0 0.0
    %96 = vmatpush1.msra.mxu0 0.0
    %97 = vmatprep.subr.mxu0 0.0
    %98 = vmatpush1.msra.mxu0 0.0
    %99 = vmatprep.subr.mxu0 0.0
    %100 = vmatpush1.msra.mxu0 %v67
    %101 = vmatprep.subr.mxu0 0.0
    %102 = vmatpush2.msra.mxu0 0.0
    %103 = vmatprep.subr.mxu0 0.0
    %104 = vmatpush2.msra.mxu0 0.0
    %105 = vmatprep.subr.mxu0 0.0
    %106 = vmatpush2.msra.mxu0 0.0
    %107 = vmatprep.subr.mxu0 0.0
    %108 = vmatpush2.msra.mxu0 0.0
    %109 = vmatprep.subr.mxu0 0.0
    %110 = vmatpush2.msra.mxu0 0.0
    %111 = vmatprep.subr.mxu0 0.0
    %112 = vmatpush2.msra.mxu0 0.0
    %113 = vmatprep.subr.mxu0 0.0
    %114 = vmatpush2.msra.mxu0 0.0
    %115 = vmatprep.subr.mxu0 0.0
    %116 = vmatpush2.msra.mxu0 0.0
    %117 = vmatprep.subr.mxu0 0.0
    %118 = vmatpush2.msra.mxu0 0.0
    %119 = vmatprep.subr.mxu0 0.0
    %120 = vmatpush2.msra.mxu0 0.0
    %121 = vmatprep.subr.mxu0 0.0
    %122 = vmatpush2.msra.mxu0 0.0
    %123 = vmatprep.subr.mxu0 0.0
    %124 = vmatpush2.msra.mxu0 0.0
    %125 = vmatprep.subr.mxu0 0.0
    %126 = vmatpush2.msra.mxu0 0.0
    %127 = vmatprep.subr.mxu0 0.0
    %128 = vmatpush2.msra.mxu0 0.0
    %129 = vmatprep.subr.mxu0 0.0
    %130 = vmatpush2.msra.mxu0 0.0
    %131 = vmatprep.subr.mxu0 0.0
    %132 = vmatpush2.msra.mxu0 0.0
    %133 = vmatprep.mubr.f32.mxu0 0.0
    %134 = vmatmul.mubr.f32.gmra.mxu0 %v42
    %v135 = vpop.f32.mrf.mxu0
    %v136 = vadd.f32 %v38, %v135
    %v137 = vpop.f32.mrf.mxu0
    %138 = vmatprep.mubr.f32.mxu0 0.0
    %139 = vmatmul.mubr.f32.gmra.mxu0 %v45
    %v140 = vpop.f32.mrf.mxu0
    %v141 = vadd.f32 %v38, %v140
    %v142 = vpop.f32.mrf.mxu0
    %143 = vmatprep.mubr.f32.mxu0 0.0
    %144 = vmatmul.mubr.f32.gmra.mxu0 %v48
    %v145 = vpop.f32.mrf.mxu0
    %v146 = vadd.f32 %v38, %v145
    %v147 = vpop.f32.mrf.mxu0
    %148 = vmatprep.mubr.f32.mxu0 0.0
    %149 = vmatmul.mubr.f32.gmra.mxu0 %v51
    %v150 = vpop.f32.mrf.mxu0
    %v151 = vadd.f32 %v38, %v150
    %v152 = vpop.f32.mrf.mxu0
    %153 = vmatprep.mubr.f32.mxu0 0.0
    %154 = vmatmul.mubr.f32.gmra.mxu0 %v54
    %v155 = vpop.f32.mrf.mxu0
    %v156 = vadd.f32 %v38, %v155
    %v157 = vpop.f32.mrf.mxu0
    %158 = vmatprep.mubr.f32.mxu0 0.0
    %159 = vmatmul.mubr.f32.gmra.mxu0 %v57
    %v160 = vpop.f32.mrf.mxu0
    %v161 = vadd.f32 %v38, %v160
    %v162 = vpop.f32.mrf.mxu0
    %163 = vmatprep.mubr.f32.mxu0 0.0
    %164 = vmatmul.mubr.f32.gmra.mxu0 %v60
    %v165 = vpop.f32.mrf.mxu0
    %v166 = vadd.f32 %v38, %v165
    %v167 = vpop.f32.mrf.mxu0
    %168 = vmatprep.mubr.f32.mxu0 0.0
    %169 = vmatmul.mubr.f32.gmra.mxu0 %v63
    %v170 = vpop.f32.mrf.mxu0
    %v171 = vadd.f32 %v38, %v170
    %v172 = vpop.f32.mrf.mxu0
    %173 = vdwg.mxu0
    %174 = vst [vmem:[#allocation2] sm:$0xff] %v136
    %175 = vst [vmem:[#allocation2 + $0x8] sm:$0xff] %v141
    %176 = vst [vmem:[#allocation2 + $0x10] sm:$0xff] %v146
    %177 = vst [vmem:[#allocation2 + $0x18] sm:$0xff] %v151
    %178 = vst [vmem:[#allocation2 + $0x20] sm:$0xff] %v156
    %179 = vst [vmem:[#allocation2 + $0x28] sm:$0xff] %v161
    %180 = vst [vmem:[#allocation2 + $0x30] sm:$0xff] %v166
    %181 = vst [vmem:[#allocation2 + $0x38] sm:$0xff] %v171
    %v182 = vld [vmem:[%s2] sm:$0xff]
    %v183 = vld [vmem:[%s2 + $0x8] sm:$0xff]
    %v184 = vld [vmem:[%s2 + $0x10] sm:$0xff]
    %v185 = vld [vmem:[%s2 + $0x18] sm:$0xff]
    %v186 = vld [vmem:[#allocation2] sm:$0xff]
    %vm187 = vcmask 261120
    %v189 = vsel %vm187, 0.0, 0
    %191 = vmatprep.subr.mxu0 0.0
    %192 = vmatpush1.msra.mxu0 0.0
    %193 = vmatprep.subr.mxu0 0.0
    %194 = vmatpush1.msra.mxu0 0.0
    %195 = vmatprep.subr.mxu0 0.0
    %196 = vmatpush1.msra.mxu0 0.0
    %197 = vmatprep.subr.mxu0 0.0
    %198 = vmatpush1.msra.mxu0 0.0
    %199 = vmatprep.subr.mxu0 0.0
    %200 = vmatpush1.msra.mxu0 0.0
    %201 = vmatprep.subr.mxu0 0.0
    %202 = vmatpush1.msra.mxu0 0.0
    %203 = vmatprep.subr.mxu0 0.0
    %204 = vmatpush1.msra.mxu0 0.0
    %205 = vmatprep.subr.mxu0 0.0
    %206 = vmatpush1.msra.mxu0 0.0
    %207 = vmatprep.subr.mxu0 0.0
    %208 = vmatpush1.msra.mxu0 0.0
    %209 = vmatprep.subr.mxu0 0.0
    %210 = vmatpush1.msra.mxu0 0.0
    %211 = vmatprep.subr.mxu0 0.0
    %212 = vmatpush1.msra.mxu0 0.0
    %213 = vmatprep.subr.mxu0 0.0
    %214 = vmatpush1.msra.mxu0 0.0
    %215 = vmatprep.subr.mxu0 0.0
    %216 = vmatpush1.msra.mxu0 %v185
    %217 = vmatprep.subr.mxu0 0.0
    %218 = vmatpush1.msra.mxu0 %v184
    %219 = vmatprep.subr.mxu0 0.0
    %220 = vmatpush1.msra.mxu0 %v183
    %221 = vmatprep.subr.mxu0 0.0
    %222 = vmatpush1.msra.mxu0 %v182
    %223 = vmatprep.subr.mxu0 0.0
    %224 = vmatpush2.msra.mxu0 0.0
    %225 = vmatprep.subr.mxu0 0.0
    %226 = vmatpush2.msra.mxu0 0.0
    %227 = vmatprep.subr.mxu0 0.0
    %228 = vmatpush2.msra.mxu0 0.0
    %229 = vmatprep.subr.mxu0 0.0
    %230 = vmatpush2.msra.mxu0 0.0
    %231 = vmatprep.subr.mxu0 0.0
    %232 = vmatpush2.msra.mxu0 0.0
    %233 = vmatprep.subr.mxu0 0.0
    %234 = vmatpush2.msra.mxu0 0.0
    %235 = vmatprep.subr.mxu0 0.0
    %236 = vmatpush2.msra.mxu0 0.0
    %237 = vmatprep.subr.mxu0 0.0
    %238 = vmatpush2.msra.mxu0 0.0
    %239 = vmatprep.subr.mxu0 0.0
    %240 = vmatpush2.msra.mxu0 0.0
    %241 = vmatprep.subr.mxu0 0.0
    %242 = vmatpush2.msra.mxu0 0.0
    %243 = vmatprep.subr.mxu0 0.0
    %244 = vmatpush2.msra.mxu0 0.0
    %245 = vmatprep.subr.mxu0 0.0
    %246 = vmatpush2.msra.mxu0 0.0
    %247 = vmatprep.subr.mxu0 0.0
    %248 = vmatpush2.msra.mxu0 0.0
    %249 = vmatprep.subr.mxu0 0.0
    %250 = vmatpush2.msra.mxu0 0.0
    %251 = vmatprep.subr.mxu0 0.0
    %252 = vmatpush2.msra.mxu0 0.0
    %253 = vmatprep.subr.mxu0 0.0
    %254 = vmatpush2.msra.mxu0 0.0
    %255 = vmatprep.mubr.f32.mxu0 0.0
    %256 = vmatmul.mubr.f32.gmra.mxu0 %v189
    %v257 = vpop.f32.mrf.mxu0
    %v258 = vadd.f32 0.0, %v257
    %v259 = vpop.f32.mrf.mxu0
    %260 = vdwg.mxu0
    %v261 = vadd.f32 %v186, %v258
    %v262 = vxor.u32 %v261, 2147483648
    %v263 = vmul.f32 %v262, 1.442695
    %v264 = vpow.pop %v263
    %v265 = vadd.f32 %v264, 1.0
    %v266 = vrcp.pop %v265
    %v267 = vmul.f32 1.0, %v266
    %v268 = vtanh.pop %v261
    %v269 = vmul.f32 %v267, 0.0
    %271 = vrot.lane.b32.xlu0 %v268, 64
    %v272 = vpop.permute.xlu0 %271
    %v274 = vmul.f32 %v267, %v272
    %276 = vrot.lane.b32.xlu0 %v274, 32
    %v277 = vpop.permute.xlu0 %276
    %v279 = vadd.f32 %v269, %v277
    %v280 = vtanh.pop %v279
    %282 = vrot.lane.b32.xlu0 %v280, 64
    %v283 = vpop.permute.xlu0 %282
    %v285 = vmul.f32 %v267, %v283
    %s286 = scalar_lea.vmem [#allocation2], 8
    %v287 = vld [vmem:[%s286] sm:$0xff]
    %289 = vrot.lane.b32.xlu0 %v285, 32
    %v290 = vpop.permute.xlu0 %289
    %v291 = vsel %vm187, %v290, 0
    %293 = vmatprep.subr.mxu0 0.0
    %294 = vmatpush1.msra.mxu0 0.0
    %295 = vmatprep.subr.mxu0 0.0
    %296 = vmatpush1.msra.mxu0 0.0
    %297 = vmatprep.subr.mxu0 0.0
    %298 = vmatpush1.msra.mxu0 0.0
    %299 = vmatprep.subr.mxu0 0.0
    %300 = vmatpush1.msra.mxu0 0.0
    %301 = vmatprep.subr.mxu0 0.0
    %302 = vmatpush1.msra.mxu0 0.0
    %303 = vmatprep.subr.mxu0 0.0
    %304 = vmatpush1.msra.mxu0 0.0
    %305 = vmatprep.subr.mxu0 0.0
    %306 = vmatpush1.msra.mxu0 0.0
    %307 = vmatprep.subr.mxu0 0.0
    %308 = vmatpush1.msra.mxu0 0.0
    %309 = vmatprep.subr.mxu0 0.0
    %310 = vmatpush1.msra.mxu0 0.0
    %311 = vmatprep.subr.mxu0 0.0
    %312 = vmatpush1.msra.mxu0 0.0
    %313 = vmatprep.subr.mxu0 0.0
    %314 = vmatpush1.msra.mxu0 0.0
    %315 = vmatprep.subr.mxu0 0.0
    %316 = vmatpush1.msra.mxu0 0.0
    %317 = vmatprep.subr.mxu0 0.0
    %318 = vmatpush1.msra.mxu0 %v185
    %319 = vmatprep.subr.mxu0 0.0
    %320 = vmatpush1.msra.mxu0 %v184
    %321 = vmatprep.subr.mxu0 0.0
    %322 = vmatpush1.msra.mxu0 %v183
    %323 = vmatprep.subr.mxu0 0.0
    %324 = vmatpush1.msra.mxu0 %v182
    %325 = vmatprep.subr.mxu0 0.0
    %326 = vmatpush2.msra.mxu0 0.0
    %327 = vmatprep.subr.mxu0 0.0
    %328 = vmatpush2.msra.mxu0 0.0
    %329 = vmatprep.subr.mxu0 0.0
    %330 = vmatpush2.msra.mxu0 0.0
    %331 = vmatprep.subr.mxu0 0.0
    %332 = vmatpush2.msra.mxu0 0.0
    %333 = vmatprep.subr.mxu0 0.0
    %334 = vmatpush2.msra.mxu0 0.0
    %335 = vmatprep.subr.mxu0 0.0
    %336 = vmatpush2.msra.mxu0 0.0
    %337 = vmatprep.subr.mxu0 0.0
    %338 = vmatpush2.msra.mxu0 0.0
    %339 = vmatprep.subr.mxu0 0.0
    %340 = vmatpush2.msra.mxu0 0.0
    %341 = vmatprep.subr.mxu0 0.0
    %342 = vmatpush2.msra.mxu0 0.0
    %343 = vmatprep.subr.mxu0 0.0
    %344 = vmatpush2.msra.mxu0 0.0
    %345 = vmatprep.subr.mxu0 0.0
    %346 = vmatpush2.msra.mxu0 0.0
    %347 = vmatprep.subr.mxu0 0.0
    %348 = vmatpush2.msra.mxu0 0.0
    %349 = vmatprep.subr.mxu0 0.0
    %350 = vmatpush2.msra.mxu0 0.0
    %351 = vmatprep.subr.mxu0 0.0
    %352 = vmatpush2.msra.mxu0 0.0
    %353 = vmatprep.subr.mxu0 0.0
    %354 = vmatpush2.msra.mxu0 0.0
    %355 = vmatprep.subr.mxu0 0.0
    %356 = vmatpush2.msra.mxu0 0.0
    %357 = vmatprep.mubr.f32.mxu0 0.0
    %358 = vmatmul.mubr.f32.gmra.mxu0 %v291
    %v359 = vpop.f32.mrf.mxu0
    %v360 = vadd.f32 0.0, %v359
    %v361 = vpop.f32.mrf.mxu0
    %362 = vdwg.mxu0
    %v363 = vadd.f32 %v287, %v360
    %v364 = vxor.u32 %v363, 2147483648
    %v365 = vmul.f32 %v364, 1.442695
    %v366 = vpow.pop %v365
    %v367 = vadd.f32 %v366, 1.0
    %v368 = vrcp.pop %v367
    %v369 = vmul.f32 1.0, %v368
    %v370 = vtanh.pop %v363
    %v371 = vmul.f32 %v369, %v279
    %373 = vrot.lane.b32.xlu0 %v370, 64
    %v374 = vpop.permute.xlu0 %373
    %v376 = vmul.f32 %v369, %v374
    %378 = vrot.lane.b32.xlu0 %v376, 32
    %v379 = vpop.permute.xlu0 %378
    %v381 = vadd.f32 %v371, %v379
    %v382 = vtanh.pop %v381
    %384 = vrot.lane.b32.xlu0 %v382, 64
    %v385 = vpop.permute.xlu0 %384
    %v387 = vmul.f32 %v369, %v385
    %s388 = scalar_lea.vmem [#allocation2], 16
    %v389 = vld [vmem:[%s388] sm:$0xff]
    %391 = vrot.lane.b32.xlu0 %v387, 32
    %v392 = vpop.permute.xlu0 %391
    %v393 = vsel %vm187, %v392, 0
    %395 = vmatprep.subr.mxu0 0.0
    %396 = vmatpush1.msra.mxu0 0.0
    %397 = vmatprep.subr.mxu0 0.0
    %398 = vmatpush1.msra.mxu0 0.0
    %399 = vmatprep.subr.mxu0 0.0
    %400 = vmatpush1.msra.mxu0 0.0
    %401 = vmatprep.subr.mxu0 0.0
    %402 = vmatpush1.msra.mxu0 0.0
    %403 = vmatprep.subr.mxu0 0.0
    %404 = vmatpush1.msra.mxu0 0.0
    %405 = vmatprep.subr.mxu0 0.0
    %406 = vmatpush1.msra.mxu0 0.0
    %407 = vmatprep.subr.mxu0 0.0
    %408 = vmatpush1.msra.mxu0 0.0
    %409 = vmatprep.subr.mxu0 0.0
    %410 = vmatpush1.msra.mxu0 0.0
    %411 = vmatprep.subr.mxu0 0.0
    %412 = vmatpush1.msra.mxu0 0.0
    %413 = vmatprep.subr.mxu0 0.0
    %414 = vmatpush1.msra.mxu0 0.0
    %415 = vmatprep.subr.mxu0 0.0
    %416 = vmatpush1.msra.mxu0 0.0
    %417 = vmatprep.subr.mxu0 0.0
    %418 = vmatpush1.msra.mxu0 0.0
    %419 = vmatprep.subr.mxu0 0.0
    %420 = vmatpush1.msra.mxu0 %v185
    %421 = vmatprep.subr.mxu0 0.0
    %422 = vmatpush1.msra.mxu0 %v184
    %423 = vmatprep.subr.mxu0 0.0
    %424 = vmatpush1.msra.mxu0 %v183
    %425 = vmatprep.subr.mxu0 0.0
    %426 = vmatpush1.msra.mxu0 %v182
    %427 = vmatprep.subr.mxu0 0.0
    %428 = vmatpush2.msra.mxu0 0.0
    %429 = vmatprep.subr.mxu0 0.0
    %430 = vmatpush2.msra.mxu0 0.0
    %431 = vmatprep.subr.mxu0 0.0
    %432 = vmatpush2.msra.mxu0 0.0
    %433 = vmatprep.subr.mxu0 0.0
    %434 = vmatpush2.msra.mxu0 0.0
    %435 = vmatprep.subr.mxu0 0.0
    %436 = vmatpush2.msra.mxu0 0.0
    %437 = vmatprep.subr.mxu0 0.0
    %438 = vmatpush2.msra.mxu0 0.0
    %439 = vmatprep.subr.mxu0 0.0
    %440 = vmatpush2.msra.mxu0 0.0
    %441 = vmatprep.subr.mxu0 0.0
    %442 = vmatpush2.msra.mxu0 0.0
    %443 = vmatprep.subr.mxu0 0.0
    %444 = vmatpush2.msra.mxu0 0.0
    %445 = vmatprep.subr.mxu0 0.0
    %446 = vmatpush2.msra.mxu0 0.0
    %447 = vmatprep.subr.mxu0 0.0
    %448 = vmatpush2.msra.mxu0 0.0
    %449 = vmatprep.subr.mxu0 0.0
    %450 = vmatpush2.msra.mxu0 0.0
    %451 = vmatprep.subr.mxu0 0.0
    %452 = vmatpush2.msra.mxu0 0.0
    %453 = vmatprep.subr.mxu0 0.0
    %454 = vmatpush2.msra.mxu0 0.0
    %455 = vmatprep.subr.mxu0 0.0
    %456 = vmatpush2.msra.mxu0 0.0
    %457 = vmatprep.subr.mxu0 0.0
    %458 = vmatpush2.msra.mxu0 0.0
    %459 = vmatprep.mubr.f32.mxu0 0.0
    %460 = vmatmul.mubr.f32.gmra.mxu0 %v393
    %v461 = vpop.f32.mrf.mxu0
    %v462 = vadd.f32 0.0, %v461
    %v463 = vpop.f32.mrf.mxu0
    %464 = vdwg.mxu0
    %v465 = vadd.f32 %v389, %v462
    %v466 = vxor.u32 %v465, 2147483648
    %v467 = vmul.f32 %v466, 1.442695
    %v468 = vpow.pop %v467
    %v469 = vadd.f32 %v468, 1.0
    %v470 = vrcp.pop %v469
    %v471 = vmul.f32 1.0, %v470
    %v472 = vtanh.pop %v465
    %v473 = vmul.f32 %v471, %v381
    %475 = vrot.lane.b32.xlu0 %v472, 64
    %v476 = vpop.permute.xlu0 %475
    %v478 = vmul.f32 %v471, %v476
    %480 = vrot.lane.b32.xlu0 %v478, 32
    %v481 = vpop.permute.xlu0 %480
    %v483 = vadd.f32 %v473, %v481
    %v484 = vtanh.pop %v483
    %486 = vrot.lane.b32.xlu0 %v484, 64
    %v487 = vpop.permute.xlu0 %486
    %v489 = vmul.f32 %v471, %v487
    %s490 = scalar_lea.vmem [#allocation2], 24
    %v491 = vld [vmem:[%s490] sm:$0xff]
    %493 = vrot.lane.b32.xlu0 %v489, 32
    %v494 = vpop.permute.xlu0 %493
    %v495 = vsel %vm187, %v494, 0
    %497 = vmatprep.subr.mxu0 0.0
    %498 = vmatpush1.msra.mxu0 0.0
    %499 = vmatprep.subr.mxu0 0.0
    %500 = vmatpush1.msra.mxu0 0.0
    %501 = vmatprep.subr.mxu0 0.0
    %502 = vmatpush1.msra.mxu0 0.0
    %503 = vmatprep.subr.mxu0 0.0
    %504 = vmatpush1.msra.mxu0 0.0
    %505 = vmatprep.subr.mxu0 0.0
    %506 = vmatpush1.msra.mxu0 0.0
    %507 = vmatprep.subr.mxu0 0.0
    %508 = vmatpush1.msra.mxu0 0.0
    %509 = vmatprep.subr.mxu0 0.0
    %510 = vmatpush1.msra.mxu0 0.0
    %511 = vmatprep.subr.mxu0 0.0
    %512 = vmatpush1.msra.mxu0 0.0
    %513 = vmatprep.subr.mxu0 0.0
    %514 = vmatpush1.msra.mxu0 0.0
    %515 = vmatprep.subr.mxu0 0.0
    %516 = vmatpush1.msra.mxu0 0.0
    %517 = vmatprep.subr.mxu0 0.0
    %518 = vmatpush1.msra.mxu0 0.0
    %519 = vmatprep.subr.mxu0 0.0
    %520 = vmatpush1.msra.mxu0 0.0
    %521 = vmatprep.subr.mxu0 0.0
    %522 = vmatpush1.msra.mxu0 %v185
    %523 = vmatprep.subr.mxu0 0.0
    %524 = vmatpush1.msra.mxu0 %v184
    %525 = vmatprep.subr.mxu0 0.0
    %526 = vmatpush1.msra.mxu0 %v183
    %527 = vmatprep.subr.mxu0 0.0
    %528 = vmatpush1.msra.mxu0 %v182
    %529 = vmatprep.subr.mxu0 0.0
    %530 = vmatpush2.msra.mxu0 0.0
    %531 = vmatprep.subr.mxu0 0.0
    %532 = vmatpush2.msra.mxu0 0.0
    %533 = vmatprep.subr.mxu0 0.0
    %534 = vmatpush2.msra.mxu0 0.0
    %535 = vmatprep.subr.mxu0 0.0
    %536 = vmatpush2.msra.mxu0 0.0
    %537 = vmatprep.subr.mxu0 0.0
    %538 = vmatpush2.msra.mxu0 0.0
    %539 = vmatprep.subr.mxu0 0.0
    %540 = vmatpush2.msra.mxu0 0.0
    %541 = vmatprep.subr.mxu0 0.0
    %542 = vmatpush2.msra.mxu0 0.0
    %543 = vmatprep.subr.mxu0 0.0
    %544 = vmatpush2.msra.mxu0 0.0
    %545 = vmatprep.subr.mxu0 0.0
    %546 = vmatpush2.msra.mxu0 0.0
    %547 = vmatprep.subr.mxu0 0.0
    %548 = vmatpush2.msra.mxu0 0.0
    %549 = vmatprep.subr.mxu0 0.0
    %550 = vmatpush2.msra.mxu0 0.0
    %551 = vmatprep.subr.mxu0 0.0
    %552 = vmatpush2.msra.mxu0 0.0
    %553 = vmatprep.subr.mxu0 0.0
    %554 = vmatpush2.msra.mxu0 0.0
    %555 = vmatprep.subr.mxu0 0.0
    %556 = vmatpush2.msra.mxu0 0.0
    %557 = vmatprep.subr.mxu0 0.0
    %558 = vmatpush2.msra.mxu0 0.0
    %559 = vmatprep.subr.mxu0 0.0
    %560 = vmatpush2.msra.mxu0 0.0
    %561 = vmatprep.mubr.f32.mxu0 0.0
    %562 = vmatmul.mubr.f32.gmra.mxu0 %v495
    %v563 = vpop.f32.mrf.mxu0
    %v564 = vadd.f32 0.0, %v563
    %v565 = vpop.f32.mrf.mxu0
    %566 = vdwg.mxu0
    %v567 = vadd.f32 %v491, %v564
    %v568 = vxor.u32 %v567, 2147483648
    %v569 = vmul.f32 %v568, 1.442695
    %v570 = vpow.pop %v569
    %v571 = vadd.f32 %v570, 1.0
    %v572 = vrcp.pop %v571
    %v573 = vmul.f32 1.0, %v572
    %v574 = vtanh.pop %v567
    %v575 = vmul.f32 %v573, %v483
    %577 = vrot.lane.b32.xlu0 %v574, 64
    %v578 = vpop.permute.xlu0 %577
    %v580 = vmul.f32 %v573, %v578
    %582 = vrot.lane.b32.xlu0 %v580, 32
    %v583 = vpop.permute.xlu0 %582
    %v585 = vadd.f32 %v575, %v583
    %v586 = vtanh.pop %v585
    %588 = vrot.lane.b32.xlu0 %v586, 64
    %v589 = vpop.permute.xlu0 %588
    %v591 = vmul.f32 %v573, %v589
    %s592 = scalar_lea.vmem [#allocation2], 32
    %v593 = vld [vmem:[%s592] sm:$0xff]
    %595 = vrot.lane.b32.xlu0 %v591, 32
    %v596 = vpop.permute.xlu0 %595
    %v597 = vsel %vm187, %v596, 0
    %599 = vmatprep.subr.mxu0 0.0
    %600 = vmatpush1.msra.mxu0 0.0
    %601 = vmatprep.subr.mxu0 0.0
    %602 = vmatpush1.msra.mxu0 0.0
    %603 = vmatprep.subr.mxu0 0.0
    %604 = vmatpush1.msra.mxu0 0.0
    %605 = vmatprep.subr.mxu0 0.0
    %606 = vmatpush1.msra.mxu0 0.0
    %607 = vmatprep.subr.mxu0 0.0
    %608 = vmatpush1.msra.mxu0 0.0
    %609 = vmatprep.subr.mxu0 0.0
    %610 = vmatpush1.msra.mxu0 0.0
    %611 = vmatprep.subr.mxu0 0.0
    %612 = vmatpush1.msra.mxu0 0.0
    %613 = vmatprep.subr.mxu0 0.0
    %614 = vmatpush1.msra.mxu0 0.0
    %615 = vmatprep.subr.mxu0 0.0
    %616 = vmatpush1.msra.mxu0 0.0
    %617 = vmatprep.subr.mxu0 0.0
    %618 = vmatpush1.msra.mxu0 0.0
    %619 = vmatprep.subr.mxu0 0.0
    %620 = vmatpush1.msra.mxu0 0.0
    %621 = vmatprep.subr.mxu0 0.0
    %622 = vmatpush1.msra.mxu0 0.0
    %623 = vmatprep.subr.mxu0 0.0
    %624 = vmatpush1.msra.mxu0 %v185
    %625 = vmatprep.subr.mxu0 0.0
    %626 = vmatpush1.msra.mxu0 %v184
    %627 = vmatprep.subr.mxu0 0.0
    %628 = vmatpush1.msra.mxu0 %v183
    %629 = vmatprep.subr.mxu0 0.0
    %630 = vmatpush1.msra.mxu0 %v182
    %631 = vmatprep.subr.mxu0 0.0
    %632 = vmatpush2.msra.mxu0 0.0
    %633 = vmatprep.subr.mxu0 0.0
    %634 = vmatpush2.msra.mxu0 0.0
    %635 = vmatprep.subr.mxu0 0.0
    %636 = vmatpush2.msra.mxu0 0.0
    %637 = vmatprep.subr.mxu0 0.0
    %638 = vmatpush2.msra.mxu0 0.0
    %639 = vmatprep.subr.mxu0 0.0
    %640 = vmatpush2.msra.mxu0 0.0
    %641 = vmatprep.subr.mxu0 0.0
    %642 = vmatpush2.msra.mxu0 0.0
    %643 = vmatprep.subr.mxu0 0.0
    %644 = vmatpush2.msra.mxu0 0.0
    %645 = vmatprep.subr.mxu0 0.0
    %646 = vmatpush2.msra.mxu0 0.0
    %647 = vmatprep.subr.mxu0 0.0
    %648 = vmatpush2.msra.mxu0 0.0
    %649 = vmatprep.subr.mxu0 0.0
    %650 = vmatpush2.msra.mxu0 0.0
    %651 = vmatprep.subr.mxu0 0.0
    %652 = vmatpush2.msra.mxu0 0.0
    %653 = vmatprep.subr.mxu0 0.0
    %654 = vmatpush2.msra.mxu0 0.0
    %655 = vmatprep.subr.mxu0 0.0
    %656 = vmatpush2.msra.mxu0 0.0
    %657 = vmatprep.subr.mxu0 0.0
    %658 = vmatpush2.msra.mxu0 0.0
    %659 = vmatprep.subr.mxu0 0.0
    %660 = vmatpush2.msra.mxu0 0.0
    %661 = vmatprep.subr.mxu0 0.0
    %662 = vmatpush2.msra.mxu0 0.0
    %663 = vmatprep.mubr.f32.mxu0 0.0
    %664 = vmatmul.mubr.f32.gmra.mxu0 %v597
    %v665 = vpop.f32.mrf.mxu0
    %v666 = vadd.f32 0.0, %v665
    %v667 = vpop.f32.mrf.mxu0
    %668 = vdwg.mxu0
    %v669 = vadd.f32 %v593, %v666
    %v670 = vxor.u32 %v669, 2147483648
    %v671 = vmul.f32 %v670, 1.442695
    %v672 = vpow.pop %v671
    %v673 = vadd.f32 %v672, 1.0
    %v674 = vrcp.pop %v673
    %v675 = vmul.f32 1.0, %v674
    %v676 = vtanh.pop %v669
    %v677 = vmul.f32 %v675, %v585
    %679 = vrot.lane.b32.xlu0 %v676, 64
    %v680 = vpop.permute.xlu0 %679
    %v682 = vmul.f32 %v675, %v680
    %684 = vrot.lane.b32.xlu0 %v682, 32
    %v685 = vpop.permute.xlu0 %684
    %v687 = vadd.f32 %v677, %v685
    %v688 = vtanh.pop %v687
    %690 = vrot.lane.b32.xlu0 %v688, 64
    %v691 = vpop.permute.xlu0 %690
    %v693 = vmul.f32 %v675, %v691
    %s694 = scalar_lea.vmem [#allocation2], 40
    %v695 = vld [vmem:[%s694] sm:$0xff]
    %697 = vrot.lane.b32.xlu0 %v693, 32
    %v698 = vpop.permute.xlu0 %697
    %v699 = vsel %vm187, %v698, 0
    %701 = vmatprep.subr.mxu0 0.0
    %702 = vmatpush1.msra.mxu0 0.0
    %703 = vmatprep.subr.mxu0 0.0
    %704 = vmatpush1.msra.mxu0 0.0
    %705 = vmatprep.subr.mxu0 0.0
    %706 = vmatpush1.msra.mxu0 0.0
    %707 = vmatprep.subr.mxu0 0.0
    %708 = vmatpush1.msra.mxu0 0.0
    %709 = vmatprep.subr.mxu0 0.0
    %710 = vmatpush1.msra.mxu0 0.0
    %711 = vmatprep.subr.mxu0 0.0
    %712 = vmatpush1.msra.mxu0 0.0
    %713 = vmatprep.subr.mxu0 0.0
    %714 = vmatpush1.msra.mxu0 0.0
    %715 = vmatprep.subr.mxu0 0.0
    %716 = vmatpush1.msra.mxu0 0.0
    %717 = vmatprep.subr.mxu0 0.0
    %718 = vmatpush1.msra.mxu0 0.0
    %719 = vmatprep.subr.mxu0 0.0
    %720 = vmatpush1.msra.mxu0 0.0
    %721 = vmatprep.subr.mxu0 0.0
    %722 = vmatpush1.msra.mxu0 0.0
    %723 = vmatprep.subr.mxu0 0.0
    %724 = vmatpush1.msra.mxu0 0.0
    %725 = vmatprep.subr.mxu0 0.0
    %726 = vmatpush1.msra.mxu0 %v185
    %727 = vmatprep.subr.mxu0 0.0
    %728 = vmatpush1.msra.mxu0 %v184
    %729 = vmatprep.subr.mxu0 0.0
    %730 = vmatpush1.msra.mxu0 %v183
    %731 = vmatprep.subr.mxu0 0.0
    %732 = vmatpush1.msra.mxu0 %v182
    %733 = vmatprep.subr.mxu0 0.0
    %734 = vmatpush2.msra.mxu0 0.0
    %735 = vmatprep.subr.mxu0 0.0
    %736 = vmatpush2.msra.mxu0 0.0
    %737 = vmatprep.subr.mxu0 0.0
    %738 = vmatpush2.msra.mxu0 0.0
    %739 = vmatprep.subr.mxu0 0.0
    %740 = vmatpush2.msra.mxu0 0.0
    %741 = vmatprep.subr.mxu0 0.0
    %742 = vmatpush2.msra.mxu0 0.0
    %743 = vmatprep.subr.mxu0 0.0
    %744 = vmatpush2.msra.mxu0 0.0
    %745 = vmatprep.subr.mxu0 0.0
    %746 = vmatpush2.msra.mxu0 0.0
    %747 = vmatprep.subr.mxu0 0.0
    %748 = vmatpush2.msra.mxu0 0.0
    %749 = vmatprep.subr.mxu0 0.0
    %750 = vmatpush2.msra.mxu0 0.0
    %751 = vmatprep.subr.mxu0 0.0
    %752 = vmatpush2.msra.mxu0 0.0
    %753 = vmatprep.subr.mxu0 0.0
    %754 = vmatpush2.msra.mxu0 0.0
    %755 = vmatprep.subr.mxu0 0.0
    %756 = vmatpush2.msra.mxu0 0.0
    %757 = vmatprep.subr.mxu0 0.0
    %758 = vmatpush2.msra.mxu0 0.0
    %759 = vmatprep.subr.mxu0 0.0
    %760 = vmatpush2.msra.mxu0 0.0
    %761 = vmatprep.subr.mxu0 0.0
    %762 = vmatpush2.msra.mxu0 0.0
    %763 = vmatprep.subr.mxu0 0.0
    %764 = vmatpush2.msra.mxu0 0.0
    %765 = vmatprep.mubr.f32.mxu0 0.0
    %766 = vmatmul.mubr.f32.gmra.mxu0 %v699
    %v767 = vpop.f32.mrf.mxu0
    %v768 = vadd.f32 0.0, %v767
    %v769 = vpop.f32.mrf.mxu0
    %770 = vdwg.mxu0
    %v771 = vadd.f32 %v695, %v768
    %v772 = vxor.u32 %v771, 2147483648
    %v773 = vmul.f32 %v772, 1.442695
    %v774 = vpow.pop %v773
    %v775 = vadd.f32 %v774, 1.0
    %v776 = vrcp.pop %v775
    %v777 = vmul.f32 1.0, %v776
    %v778 = vtanh.pop %v771
    %v779 = vmul.f32 %v777, %v687
    %781 = vrot.lane.b32.xlu0 %v778, 64
    %v782 = vpop.permute.xlu0 %781
    %v784 = vmul.f32 %v777, %v782
    %786 = vrot.lane.b32.xlu0 %v784, 32
    %v787 = vpop.permute.xlu0 %786
    %v789 = vadd.f32 %v779, %v787
    %v790 = vtanh.pop %v789
    %792 = vrot.lane.b32.xlu0 %v790, 64
    %v793 = vpop.permute.xlu0 %792
    %v795 = vmul.f32 %v777, %v793
    %s796 = scalar_lea.vmem [#allocation2], 48
    %v797 = vld [vmem:[%s796] sm:$0xff]
    %799 = vrot.lane.b32.xlu0 %v795, 32
    %v800 = vpop.permute.xlu0 %799
    %v801 = vsel %vm187, %v800, 0
    %803 = vmatprep.subr.mxu0 0.0
    %804 = vmatpush1.msra.mxu0 0.0
    %805 = vmatprep.subr.mxu0 0.0
    %806 = vmatpush1.msra.mxu0 0.0
    %807 = vmatprep.subr.mxu0 0.0
    %808 = vmatpush1.msra.mxu0 0.0
    %809 = vmatprep.subr.mxu0 0.0
    %810 = vmatpush1.msra.mxu0 0.0
    %811 = vmatprep.subr.mxu0 0.0
    %812 = vmatpush1.msra.mxu0 0.0
    %813 = vmatprep.subr.mxu0 0.0
    %814 = vmatpush1.msra.mxu0 0.0
    %815 = vmatprep.subr.mxu0 0.0
    %816 = vmatpush1.msra.mxu0 0.0
    %817 = vmatprep.subr.mxu0 0.0
    %818 = vmatpush1.msra.mxu0 0.0
    %819 = vmatprep.subr.mxu0 0.0
    %820 = vmatpush1.msra.mxu0 0.0
    %821 = vmatprep.subr.mxu0 0.0
    %822 = vmatpush1.msra.mxu0 0.0
    %823 = vmatprep.subr.mxu0 0.0
    %824 = vmatpush1.msra.mxu0 0.0
    %825 = vmatprep.subr.mxu0 0.0
    %826 = vmatpush1.msra.mxu0 0.0
    %827 = vmatprep.subr.mxu0 0.0
    %828 = vmatpush1.msra.mxu0 %v185
    %829 = vmatprep.subr.mxu0 0.0
    %830 = vmatpush1.msra.mxu0 %v184
    %831 = vmatprep.subr.mxu0 0.0
    %832 = vmatpush1.msra.mxu0 %v183
    %833 = vmatprep.subr.mxu0 0.0
    %834 = vmatpush1.msra.mxu0 %v182
    %835 = vmatprep.subr.mxu0 0.0
    %836 = vmatpush2.msra.mxu0 0.0
    %837 = vmatprep.subr.mxu0 0.0
    %838 = vmatpush2.msra.mxu0 0.0
    %839 = vmatprep.subr.mxu0 0.0
    %840 = vmatpush2.msra.mxu0 0.0
    %841 = vmatprep.subr.mxu0 0.0
    %842 = vmatpush2.msra.mxu0 0.0
    %843 = vmatprep.subr.mxu0 0.0
    %844 = vmatpush2.msra.mxu0 0.0
    %845 = vmatprep.subr.mxu0 0.0
    %846 = vmatpush2.msra.mxu0 0.0
    %847 = vmatprep.subr.mxu0 0.0
    %848 = vmatpush2.msra.mxu0 0.0
    %849 = vmatprep.subr.mxu0 0.0
    %850 = vmatpush2.msra.mxu0 0.0
    %851 = vmatprep.subr.mxu0 0.0
    %852 = vmatpush2.msra.mxu0 0.0
    %853 = vmatprep.subr.mxu0 0.0
    %854 = vmatpush2.msra.mxu0 0.0
    %855 = vmatprep.subr.mxu0 0.0
    %856 = vmatpush2.msra.mxu0 0.0
    %857 = vmatprep.subr.mxu0 0.0
    %858 = vmatpush2.msra.mxu0 0.0
    %859 = vmatprep.subr.mxu0 0.0
    %860 = vmatpush2.msra.mxu0 0.0
    %861 = vmatprep.subr.mxu0 0.0
    %862 = vmatpush2.msra.mxu0 0.0
    %863 = vmatprep.subr.mxu0 0.0
    %864 = vmatpush2.msra.mxu0 0.0
    %865 = vmatprep.subr.mxu0 0.0
    %866 = vmatpush2.msra.mxu0 0.0
    %867 = vmatprep.mubr.f32.mxu0 0.0
    %868 = vmatmul.mubr.f32.gmra.mxu0 %v801
    %v869 = vpop.f32.mrf.mxu0
    %v870 = vadd.f32 0.0, %v869
    %v871 = vpop.f32.mrf.mxu0
    %872 = vdwg.mxu0
    %v873 = vadd.f32 %v797, %v870
    %v874 = vxor.u32 %v873, 2147483648
    %v875 = vmul.f32 %v874, 1.442695
    %v876 = vpow.pop %v875
    %v877 = vadd.f32 %v876, 1.0
    %v878 = vrcp.pop %v877
    %v879 = vmul.f32 1.0, %v878
    %v880 = vtanh.pop %v873
    %v881 = vmul.f32 %v879, %v789
    %883 = vrot.lane.b32.xlu0 %v880, 64
    %v884 = vpop.permute.xlu0 %883
    %v886 = vmul.f32 %v879, %v884
    %888 = vrot.lane.b32.xlu0 %v886, 32
    %v889 = vpop.permute.xlu0 %888
    %v891 = vadd.f32 %v881, %v889
    %v892 = vtanh.pop %v891
    %894 = vrot.lane.b32.xlu0 %v892, 64
    %v895 = vpop.permute.xlu0 %894
    %v897 = vmul.f32 %v879, %v895
    %s898 = scalar_lea.vmem [#allocation2], 56
    %v899 = vld [vmem:[%s898] sm:$0xff]
    %901 = vrot.lane.b32.xlu0 %v897, 32
    %v902 = vpop.permute.xlu0 %901
    %v903 = vsel %vm187, %v902, 0
    %905 = vmatprep.subr.mxu0 0.0
    %906 = vmatpush1.msra.mxu0 0.0
    %907 = vmatprep.subr.mxu0 0.0
    %908 = vmatpush1.msra.mxu0 0.0
    %909 = vmatprep.subr.mxu0 0.0
    %910 = vmatpush1.msra.mxu0 0.0
    %911 = vmatprep.subr.mxu0 0.0
    %912 = vmatpush1.msra.mxu0 0.0
    %913 = vmatprep.subr.mxu0 0.0
    %914 = vmatpush1.msra.mxu0 0.0
    %915 = vmatprep.subr.mxu0 0.0
    %916 = vmatpush1.msra.mxu0 0.0
    %917 = vmatprep.subr.mxu0 0.0
    %918 = vmatpush1.msra.mxu0 0.0
    %919 = vmatprep.subr.mxu0 0.0
    %920 = vmatpush1.msra.mxu0 0.0
    %921 = vmatprep.subr.mxu0 0.0
    %922 = vmatpush1.msra.mxu0 0.0
    %923 = vmatprep.subr.mxu0 0.0
    %924 = vmatpush1.msra.mxu0 0.0
    %925 = vmatprep.subr.mxu0 0.0
    %926 = vmatpush1.msra.mxu0 0.0
    %927 = vmatprep.subr.mxu0 0.0
    %928 = vmatpush1.msra.mxu0 0.0
    %929 = vmatprep.subr.mxu0 0.0
    %930 = vmatpush1.msra.mxu0 %v185
    %931 = vmatprep.subr.mxu0 0.0
    %932 = vmatpush1.msra.mxu0 %v184
    %933 = vmatprep.subr.mxu0 0.0
    %934 = vmatpush1.msra.mxu0 %v183
    %935 = vmatprep.subr.mxu0 0.0
    %936 = vmatpush1.msra.mxu0 %v182
    %937 = vmatprep.subr.mxu0 0.0
    %938 = vmatpush2.msra.mxu0 0.0
    %939 = vmatprep.subr.mxu0 0.0
    %940 = vmatpush2.msra.mxu0 0.0
    %941 = vmatprep.subr.mxu0 0.0
    %942 = vmatpush2.msra.mxu0 0.0
    %943 = vmatprep.subr.mxu0 0.0
    %944 = vmatpush2.msra.mxu0 0.0
    %945 = vmatprep.subr.mxu0 0.0
    %946 = vmatpush2.msra.mxu0 0.0
    %947 = vmatprep.subr.mxu0 0.0
    %948 = vmatpush2.msra.mxu0 0.0
    %949 = vmatprep.subr.mxu0 0.0
    %950 = vmatpush2.msra.mxu0 0.0
    %951 = vmatprep.subr.mxu0 0.0
    %952 = vmatpush2.msra.mxu0 0.0
    %953 = vmatprep.subr.mxu0 0.0
    %954 = vmatpush2.msra.mxu0 0.0
    %955 = vmatprep.subr.mxu0 0.0
    %956 = vmatpush2.msra.mxu0 0.0
    %957 = vmatprep.subr.mxu0 0.0
    %958 = vmatpush2.msra.mxu0 0.0
    %959 = vmatprep.subr.mxu0 0.0
    %960 = vmatpush2.msra.mxu0 0.0
    %961 = vmatprep.subr.mxu0 0.0
    %962 = vmatpush2.msra.mxu0 0.0
    %963 = vmatprep.subr.mxu0 0.0
    %964 = vmatpush2.msra.mxu0 0.0
    %965 = vmatprep.subr.mxu0 0.0
    %966 = vmatpush2.msra.mxu0 0.0
    %967 = vmatprep.subr.mxu0 0.0
    %968 = vmatpush2.msra.mxu0 0.0
    %969 = vmatprep.mubr.f32.mxu0 0.0
    %970 = vmatmul.mubr.f32.gmra.mxu0 %v903
    %v971 = vpop.f32.mrf.mxu0
    %v972 = vadd.f32 0.0, %v971
    %v973 = vpop.f32.mrf.mxu0
    %974 = vdwg.mxu0
    %v975 = vadd.f32 %v899, %v972
    %v976 = vxor.u32 %v975, 2147483648
    %v977 = vmul.f32 %v976, 1.442695
    %v978 = vpow.pop %v977
    %v979 = vadd.f32 %v978, 1.0
    %v980 = vrcp.pop %v979
    %v981 = vmul.f32 1.0, %v980
    %v982 = vtanh.pop %v975
    %v983 = vmul.f32 %v981, %v891
    %985 = vrot.lane.b32.xlu0 %v982, 64
    %v986 = vpop.permute.xlu0 %985
    %v988 = vmul.f32 %v981, %v986
    %990 = vrot.lane.b32.xlu0 %v988, 32
    %v991 = vpop.permute.xlu0 %990
    %v993 = vadd.f32 %v983, %v991
    %v994 = vtanh.pop %v993
    %996 = vrot.lane.b32.xlu0 %v994, 64
    %v997 = vpop.permute.xlu0 %996
    %v999 = vmul.f32 %v981, %v997
    %v1000 = vld [vmem:[%s4] sm:$0xff]
    %v1001 = vld [vmem:[%s4 + $0x8] sm:$0xff]
    %v1002 = vld [vmem:[%s4 + $0x10] sm:$0xff]
    %v1003 = vld [vmem:[%s4 + $0x18] sm:$0xff]
    %v1004 = vld [vmem:[%s5] sm:$0x1]
    %v1006 = vlaneseq
    %v1007 = vshrl.u32 %v1006, 7
    %v1008 = vsub.s32 0, %v1007
    %v1009 = vrot.slane %v1004, %v1008
    %1012 = vrot.lane.b32.xlu0 %v999, 32
    %v1013 = vpop.permute.xlu0 %1012
    %v1014 = vsel %vm187, %v1013, 0
    %1016 = vmatprep.subr.mxu0 0.0
    %1017 = vmatpush1.msra.mxu0 0.0
    %1018 = vmatprep.subr.mxu0 0.0
    %1019 = vmatpush1.msra.mxu0 0.0
    %1020 = vmatprep.subr.mxu0 0.0
    %1021 = vmatpush1.msra.mxu0 0.0
    %1022 = vmatprep.subr.mxu0 0.0
    %1023 = vmatpush1.msra.mxu0 0.0
    %1024 = vmatprep.subr.mxu0 0.0
    %1025 = vmatpush1.msra.mxu0 0.0
    %1026 = vmatprep.subr.mxu0 0.0
    %1027 = vmatpush1.msra.mxu0 0.0
    %1028 = vmatprep.subr.mxu0 0.0
    %1029 = vmatpush1.msra.mxu0 0.0
    %1030 = vmatprep.subr.mxu0 0.0
    %1031 = vmatpush1.msra.mxu0 0.0
    %1032 = vmatprep.subr.mxu0 0.0
    %1033 = vmatpush1.msra.mxu0 0.0
    %1034 = vmatprep.subr.mxu0 0.0
    %1035 = vmatpush1.msra.mxu0 0.0
    %1036 = vmatprep.subr.mxu0 0.0
    %1037 = vmatpush1.msra.mxu0 0.0
    %1038 = vmatprep.subr.mxu0 0.0
    %1039 = vmatpush1.msra.mxu0 0.0
    %1040 = vmatprep.subr.mxu0 0.0
    %1041 = vmatpush1.msra.mxu0 %v1003
    %1042 = vmatprep.subr.mxu0 0.0
    %1043 = vmatpush1.msra.mxu0 %v1002
    %1044 = vmatprep.subr.mxu0 0.0
    %1045 = vmatpush1.msra.mxu0 %v1001
    %1046 = vmatprep.subr.mxu0 0.0
    %1047 = vmatpush1.msra.mxu0 %v1000
    %1048 = vmatprep.subr.mxu0 0.0
    %1049 = vmatpush2.msra.mxu0 0.0
    %1050 = vmatprep.subr.mxu0 0.0
    %1051 = vmatpush2.msra.mxu0 0.0
    %1052 = vmatprep.subr.mxu0 0.0
    %1053 = vmatpush2.msra.mxu0 0.0
    %1054 = vmatprep.subr.mxu0 0.0
    %1055 = vmatpush2.msra.mxu0 0.0
    %1056 = vmatprep.subr.mxu0 0.0
    %1057 = vmatpush2.msra.mxu0 0.0
    %1058 = vmatprep.subr.mxu0 0.0
    %1059 = vmatpush2.msra.mxu0 0.0
    %1060 = vmatprep.subr.mxu0 0.0
    %1061 = vmatpush2.msra.mxu0 0.0
    %1062 = vmatprep.subr.mxu0 0.0
    %1063 = vmatpush2.msra.mxu0 0.0
    %1064 = vmatprep.subr.mxu0 0.0
    %1065 = vmatpush2.msra.mxu0 0.0
    %1066 = vmatprep.subr.mxu0 0.0
    %1067 = vmatpush2.msra.mxu0 0.0
    %1068 = vmatprep.subr.mxu0 0.0
    %1069 = vmatpush2.msra.mxu0 0.0
    %1070 = vmatprep.subr.mxu0 0.0
    %1071 = vmatpush2.msra.mxu0 0.0
    %1072 = vmatprep.subr.mxu0 0.0
    %1073 = vmatpush2.msra.mxu0 0.0
    %1074 = vmatprep.subr.mxu0 0.0
    %1075 = vmatpush2.msra.mxu0 0.0
    %1076 = vmatprep.subr.mxu0 0.0
    %1077 = vmatpush2.msra.mxu0 0.0
    %1078 = vmatprep.subr.mxu0 0.0
    %1079 = vmatpush2.msra.mxu0 0.0
    %1080 = vmatprep.mubr.f32.mxu0 0.0
    %1081 = vmatmul.mubr.f32.gmra.mxu0 %v1014
    %v1082 = vpop.f32.mrf.mxu0
    %v1083 = vadd.f32 %v1009, %v1082
    %v1084 = vpop.f32.mrf.mxu0
    %1085 = vdwg.mxu0
    %1086 = vst [vmem:[#allocation3] sm:$0xff] %v1083
    // Predicated region
    $region26: #{tpu_custom_call.1} parent=1 // pred_check
      _
    $region27: #{tpu_custom_call.1} parent=1 // pred_check_branch
      %1088 = sbr.rel (0) target = $region29
    $region28: #{tpu_custom_call.1} parent=1 // pred_region
      %s1090 = ssub.s32 128, 128
      %1091 = vsyncadd [#allocation4], %s1090
      %s1093 = sshll.u32 [#allocation3], 4
      %s1094 = int_to_ptr.vmem [resolvable:$true] %s1093
      %1096 = dma.vmem_to_hbm [thread:$0]  %s1094, 128, %s6, [#allocation4]
    $region29: #{tpu_custom_call.1} parent=1 // pred_fallthru
      _
    // Predicated region
    $region30: #{tpu_custom_call.1} parent=1 // pred_check
      _
    $region31: #{tpu_custom_call.1} parent=1 // pred_check_branch
      %1098 = sbr.rel (0) target = $region33
    $region32: #{tpu_custom_call.1} parent=1 // pred_region
      %1099 = dma.done [#allocation4], 128
    $region33: #{tpu_custom_call.1} parent=1 // pred_fallthru
      _
    %1100 = vsyncpa [#allocation4], 1

</llo_original>
